<compile_context>
chip_gen: v6e
topology: v6e:2x2x1
jax: 0.10.0
libtpu: 0.0.40
codegen_flags: <defaults>
</compile_context>

<pallas_src>
import jax
import jax.numpy as jnp
from jax.experimental import pallas as pl
from jax.experimental.pallas import tpu as pltpu


def _swish_kernel(x_ref, o_ref):
    x = x_ref[...]
    half = jnp.asarray(0.5, dtype=x.dtype)
    # sigmoid(x) == 0.5 * (tanh(0.5 * x) + 1): one EUP push per element.
    o_ref[...] = (x * (half * jnp.tanh(half * x) + half)).astype(o_ref.dtype)


_LANE_WIDTHS = (2048, 1024, 512, 256, 128)


def _pick_block_bytes():
    """Per-generation block size so 4 double-buffered blocks fit scoped VMEM."""
    try:
        kind = jax.devices()[0].device_kind.lower()
    except Exception:  # pragma: no cover - defensive
        return 2 * 1024 * 1024
    if "v7" in kind or "tpu7" in kind:
        return 6 * 1024 * 1024  # 4 x 6 MiB = 24 MiB < 32 MiB default scoped limit
    if "v6" in kind:
        return 4 * 1024 * 1024  # 4 x 4 MiB = 16 MiB < 32 MiB default scoped limit
    return 2 * 1024 * 1024      # v5e / unknown: 4 x 2 MiB = 8 MiB < 16 MiB limit


def _swish_2d(x2d):
    """Run the Pallas kernel over a lane-dense (rows, width) slab."""
    rows, width = x2d.shape
    dtype = x2d.dtype
    itemsize = jnp.dtype(dtype).itemsize

    # Packed-sublane multiple: 8 for 4-byte, 16 for 2-byte, 32 for 1-byte dtypes.
    sub = 8 * max(1, 4 // itemsize)

    block_bytes = _pick_block_bytes()
    target_rows = max(sub, block_bytes // (width * itemsize))
    if rows <= target_rows:
        block_rows = rows  # full extent along rows -> always legal
    else:
        block_rows = max(sub, (target_rows // sub) * sub)

    grid = (pl.cdiv(rows, block_rows),)  # ragged last block: stores masked

    return pl.pallas_call(
        _swish_kernel,
        out_shape=jax.ShapeDtypeStruct((rows, width), dtype),
        grid_spec=pltpu.PrefetchScalarGridSpec(
            num_scalar_prefetch=0,
            grid=grid,
            in_specs=[pl.BlockSpec((block_rows, width), lambda i: (i, 0))],
            out_specs=pl.BlockSpec((block_rows, width), lambda i: (i, 0)),
        ),
        compiler_params=pltpu.CompilerParams(
            # "parallel" lets v7x shard the single loop axis across its two
            # TensorCores; neutral (and safe) on single-TC v5e/v6e.
            dimension_semantics=("parallel",),
        ),
    )(x2d)


def swish(x):
    """Elementwise x * sigmoid(x) (Swish / SiLU). Layout-agnostic."""
    if not jnp.issubdtype(x.dtype, jnp.floating):
        raise TypeError(f"swish expects a floating dtype, got {x.dtype}")

    orig_shape = x.shape
    n = x.size
    if n == 0:
        return x

    x_flat = x.reshape(-1)

    # Widest lane-dense width that divides n -> reshape is a free bitcast.
    width = None
    for cand in _LANE_WIDTHS:
        if n % cand == 0:
            width = cand
            break

    if width is not None:
        rows = n // width
        out2d = _swish_2d(x_flat.reshape(rows, width))
        return out2d.reshape(orig_shape)

    # Rare fallback (n not a multiple of 128): kernel on the 128-aligned bulk,
    # tiny (<128 elem) tail via plain XLA. Avoids full-tensor pad + slice.
    width = 128
    n_bulk = (n // width) * width
    tail = x_flat[n_bulk:]
    tail_out = (tail * jax.nn.sigmoid(tail)).astype(x.dtype)
    if n_bulk == 0:
        return tail_out.reshape(orig_shape)
    bulk_out = _swish_2d(x_flat[:n_bulk].reshape(n_bulk // width, width))
    out_flat = jnp.concatenate([bulk_out.reshape(-1), tail_out])
    return out_flat.reshape(orig_shape)


if __name__ == "__main__":
    key = jax.random.PRNGKey(0)
    k1, k2, k3 = jax.random.split(key, 3)

    ok = True

    # Primary case (matches the PyTorch module's typical NCHW input).
    x = jax.random.normal(key, (2, 4, 16, 16), dtype=jnp.float32)
    y = swish(x)
    jax.block_until_ready(y)
    y_ref = x * jax.nn.sigmoid(x)
    ok &= y.shape == x.shape and y.dtype == x.dtype
    ok &= bool(jnp.allclose(y, y_ref, atol=1e-5, rtol=1e-5))

    # Larger lane-dense case (multi-block / masked edge block on v5e).
    x2 = jax.random.normal(k1, (2, 3, 320, 320), dtype=jnp.float32)
    y2 = swish(x2)
    jax.block_until_ready(y2)
    ok &= bool(jnp.allclose(y2, x2 * jax.nn.sigmoid(x2), atol=1e-5, rtol=1e-5))

    # bf16 path (exercises the 16-row packed-sublane alignment).
    x3 = jax.random.normal(k2, (2, 8, 32, 128), dtype=jnp.bfloat16)
    y3 = swish(x3)
    jax.block_until_ready(y3)
    ok &= y3.dtype == jnp.bfloat16
    ok &= bool(
        jnp.allclose(
            y3.astype(jnp.float32),
            (x3 * jax.nn.sigmoid(x3)).astype(jnp.float32),
            atol=2e-2,
            rtol=2e-2,
        )
    )

    # Fallback path: element count not a multiple of 128 (bulk + tiny tail).
    x4 = jax.random.normal(k3, (3, 5, 7, 9), dtype=jnp.float32)
    y4 = swish(x4)
    jax.block_until_ready(y4)
    ok &= bool(jnp.allclose(y4, x4 * jax.nn.sigmoid(x4), atol=1e-5, rtol=1e-5))

    assert ok
    print("KERNEL_OK")
</pallas_src>

<mosaic_0001>
module attributes {stable_mosaic.version = 11 : i64} {
  func.func @_swish_kernel(%arg0: i32, %arg1: memref<1x2048xf32, #tpu.memory_space<vmem>>, %arg2: memref<1x2048xf32, #tpu.memory_space<vmem>>) attributes {dimension_semantics = [#tpu.dimension_semantics<parallel>], iteration_bounds = array<i64: 1>, scalar_prefetch = 0 : i64, scratch_operands = 0 : i64, tpu.core_type = #tpu.core_type<tc>, window_params = [{transform_indices = @transform_0, window_bounds = array<i64: 1, 2048>}, {transform_indices = @transform_1, window_bounds = array<i64: 1, 2048>}]} {
    %c0 = arith.constant 0 : index
    %c0_0 = arith.constant 0 : index
    %0 = vector.load %arg1[%c0, %c0_0] : memref<1x2048xf32, #tpu.memory_space<vmem>>, vector<1x2048xf32>
    %cst = arith.constant 5.000000e-01 : f32
    %1 = vector.broadcast %cst : f32 to vector<1x2048xf32>
    %2 = arith.mulf %1, %0 : vector<1x2048xf32>
    %3 = math.tanh %2 : vector<1x2048xf32>
    %cst_1 = arith.constant 5.000000e-01 : f32
    %4 = vector.broadcast %cst_1 : f32 to vector<1x2048xf32>
    %5 = arith.mulf %4, %3 : vector<1x2048xf32>
    %cst_2 = arith.constant 5.000000e-01 : f32
    %6 = vector.broadcast %cst_2 : f32 to vector<1x2048xf32>
    %7 = arith.addf %5, %6 : vector<1x2048xf32>
    %8 = arith.mulf %0, %7 : vector<1x2048xf32>
    %c0_3 = arith.constant 0 : index
    %c0_4 = arith.constant 0 : index
    %9 = vector.load %arg2[%c0_3, %c0_4] : memref<1x2048xf32, #tpu.memory_space<vmem>>, vector<1x2048xf32>
    tpu.vector_store %arg2[%c0_3, %c0_4], %8 {strides = array<i32>} : memref<1x2048xf32, #tpu.memory_space<vmem>>, vector<1x2048xf32>,
    return
  }
  func.func @transform_0(%arg0: i32) -> (i32, i32) {
    %c0_i32 = arith.constant 0 : i32
    %c0_i32_0 = arith.constant 0 : i32
    return %arg0, %c0_i32 : i32, i32
  }
  func.func @transform_1(%arg0: i32) -> (i32, i32) {
    %c0_i32 = arith.constant 0 : i32
    %c0_i32_0 = arith.constant 0 : i32
    return %arg0, %c0_i32 : i32, i32
  }
}

</mosaic_0001>

<llo_original>
// kernel: tpu_custom_call.1
$region0: #{tpu_custom_call.1}
  #allocation0 [shape = 'u32[]', space=smem, size = 0x4, offset = 0x4, fixed_abs, tag = 'smem constant byte address 0x4 - core index']
  #allocation1 [shape = 'u32[144,128]{1,0:T(1,128)}', space=vmem, size = 0x12000, scoped, tag = 'internal scratch']
  %s0 = inlined_call_operand.hbm [shape: f32[1,2048], index: 0, kind: input, shape index: {}]
  %s1 = inlined_call_operand.hbm [shape: f32[1,2048], index: 1, kind: output, shape index: {}]
  %s2 = sld [smem:[#allocation0]]
  $region18: #{tpu_custom_call.1} parent=0
    _
  %s4 = ssub.s32 1, %s2
  %s5 = scalar_select 0, %s4, %s2
  $region1: #{tpu_custom_call.1} parent=0
    #allocation2 [shape = 'u8[8192]{0}', space=vmem, size = 0x2000, scoped, tag = 'input window, operand 0, single buffered']
    #allocation3 [shape = 's32[1]{0}', space=sflag, size = 0x4, scoped, tag = 'scoped memory for tpu_custom_call.1']
    #allocation4 [shape = 's32[1]{0}', space=sflag, size = 0x4, scoped, tag = 'scoped memory for tpu_custom_call.1']
    #allocation5 [shape = 'u8[8192]{0}', space=vmem, size = 0x2000, scoped, tag = 'output window, operand 0, single buffered']
    %6 = vsyncpa [#allocation3], 0
    %7 = vsyncpa [#allocation4], 0
    // Predicated region
    $region2: #{tpu_custom_call.1} parent=1 // pred_check
      _
    $region3: #{tpu_custom_call.1} parent=1 // pred_check_branch
      %9 = sbr.rel (0) target = $region5
    $region4: #{tpu_custom_call.1} parent=1 // pred_region
      %s11 = ssub.s32 256, 256
      %12 = vsyncadd [#allocation3], %s11
      %s14 = sshll.u32 [#allocation2], 4
      %s15 = int_to_ptr.vmem [resolvable:$true] %s14
      %17 = dma.hbm_to_vmem [thread:$0]  %s0, 256, %s15, [#allocation3]
    $region5: #{tpu_custom_call.1} parent=1 // pred_fallthru
      _
    // Predicated region
    $region6: #{tpu_custom_call.1} parent=1 // pred_check
      _
    $region7: #{tpu_custom_call.1} parent=1 // pred_check_branch
      %19 = sbr.rel (0) target = $region9
    $region8: #{tpu_custom_call.1} parent=1 // pred_region
      %20 = dma.done [#allocation3], 256
    $region9: #{tpu_custom_call.1} parent=1 // pred_fallthru
      _
    %v21 = vld [vmem:[#allocation2] sm:$0xff]
    %v22 = vld [vmem:[#allocation2 + $0x8] sm:$0xff]
    %v23 = vmul.f32 %v21, 0.5
    %v24 = vmul.f32 %v22, 0.5
    %v25 = vtanh.pop %v23
    %v26 = vtanh.pop %v24
    %v27 = vmul.f32 %v25, 0.5
    %v28 = vmul.f32 %v26, 0.5
    %v29 = vadd.f32 %v27, 0.5
    %v30 = vadd.f32 %v28, 0.5
    %v31 = vmul.f32 %v21, %v29
    %v32 = vmul.f32 %v22, %v30
    %33 = vst [vmem:[#allocation5] sm:$0xff] %v31
    %34 = vst [vmem:[#allocation5 + $0x8] sm:$0xff] %v32
    // Predicated region
    $region10: #{tpu_custom_call.1} parent=1 // pred_check
      _
    $region11: #{tpu_custom_call.1} parent=1 // pred_check_branch
      %36 = sbr.rel (0) target = $region13
    $region12: #{tpu_custom_call.1} parent=1 // pred_region
      %s38 = ssub.s32 256, 256
      %39 = vsyncadd [#allocation4], %s38
      %s41 = sshll.u32 [#allocation5], 4
      %s42 = int_to_ptr.vmem [resolvable:$true] %s41
      %44 = dma.vmem_to_hbm [thread:$0]  %s42, 256, %s1, [#allocation4]
    $region13: #{tpu_custom_call.1} parent=1 // pred_fallthru
      _
    // Predicated region
    $region14: #{tpu_custom_call.1} parent=1 // pred_check
      _
    $region15: #{tpu_custom_call.1} parent=1 // pred_check_branch
      %46 = sbr.rel (0) target = $region17
    $region16: #{tpu_custom_call.1} parent=1 // pred_region
      %47 = dma.done [#allocation4], 256
    $region17: #{tpu_custom_call.1} parent=1 // pred_fallthru
      _
    %48 = vsyncpa [#allocation3], 1
    %49 = vsyncpa [#allocation4], 1

</llo_original>
